<compile_context>
chip_gen: v5e
topology: v5e:2x2
jax: 0.10.0
libtpu: 0.0.40
codegen_flags: <defaults>
</compile_context>

<pallas_src>
import math
from functools import partial

import numpy as np
import jax
import jax.numpy as jnp
from jax.experimental import pallas as pl
from jax.experimental.pallas import tpu as pltpu

ACT_DTYPE = jnp.bfloat16      # activations / MXU operands
ACC_DTYPE = jnp.float32       # accumulators / norm & softmax math


def _tile(dim, pref, align):
    """Largest tile <= pref that is a multiple of `align` and divides `dim`;
    falls back to the full dim (always a legal block size)."""
    if dim % align == 0:
        t = (min(pref, dim) // align) * align
        while dim % t != 0:
            t -= align
        return t
    return dim


# ----------------------------------------------------------------------------
# Pallas kernels
# ----------------------------------------------------------------------------
def _mm_bias_kernel(a_ref, b_ref, bias_ref, o_ref, acc_ref):
    """Tiled matmul, f32 accumulation, bias fused into the final store."""
    @pl.when(pl.program_id(2) == 0)
    def _():
        acc_ref[...] = jnp.zeros_like(acc_ref)

    acc_ref[...] += jnp.dot(a_ref[...], b_ref[...],
                            preferred_element_type=jnp.float32)

    @pl.when(pl.program_id(2) == pl.num_programs(2) - 1)
    def _():
        o_ref[...] = (acc_ref[...] + bias_ref[...]).astype(o_ref.dtype)


def _rms_mm_kernel(x_ref, g_ref, w_ref, o_ref, *, rms_scale):
    """RMSNorm over channels fused as a prologue of a (1x1 conv) matmul."""
    x = x_ref[...].astype(jnp.float32)
    nrm = jnp.maximum(jnp.sqrt(jnp.sum(x * x, axis=-1, keepdims=True)), 1e-12)
    xn = (x / nrm) * (g_ref[...] * rms_scale)
    o_ref[...] = jnp.dot(xn.astype(ACT_DTYPE), w_ref[...],
                         preferred_element_type=jnp.float32).astype(o_ref.dtype)


def _rms_kernel(x_ref, g_ref, o_ref, *, rms_scale):
    x = x_ref[...].astype(jnp.float32)
    nrm = jnp.maximum(jnp.sqrt(jnp.sum(x * x, axis=-1, keepdims=True)), 1e-12)
    o_ref[...] = ((x / nrm) * (g_ref[...] * rms_scale)).astype(o_ref.dtype)


def _norm_silu_kernel(x_ref, g_ref, o_ref, *, rms_scale):
    x = x_ref[...].astype(jnp.float32)
    nrm = jnp.maximum(jnp.sqrt(jnp.sum(x * x, axis=-1, keepdims=True)), 1e-12)
    y = (x / nrm) * (g_ref[...] * rms_scale)
    o_ref[...] = (y * (1.0 / (1.0 + jnp.exp(-y)))).astype(o_ref.dtype)


def _norm_mod_silu_kernel(x_ref, g_ref, s_ref, t_ref, o_ref, *, rms_scale):
    x = x_ref[...].astype(jnp.float32)
    nrm = jnp.maximum(jnp.sqrt(jnp.sum(x * x, axis=-1, keepdims=True)), 1e-12)
    xn = (x / nrm) * (g_ref[...] * rms_scale)
    y = xn * (s_ref[...] + 1.0) + t_ref[...]
    o_ref[...] = (y * (1.0 / (1.0 + jnp.exp(-y)))).astype(o_ref.dtype)


def _attn_kernel(q_ref, k_ref, v_ref, o_ref, *, scale):
    """Exact softmax attention for one (batch*head); f32 softmax, bf16 MXU ops."""
    q = q_ref[0]                                           # (Nq, D) bf16
    k = k_ref[0]                                           # (Nk, D) bf16
    v = v_ref[0]
    s = jax.lax.dot_general(q, k, (((1,), (1,)), ((), ())),
                            preferred_element_type=jnp.float32) * scale
    m = jnp.max(s, axis=-1, keepdims=True)
    p = jnp.exp(s - m)
    p = p / jnp.sum(p, axis=-1, keepdims=True)
    o = jnp.dot(p.astype(v.dtype), v, preferred_element_type=jnp.float32)
    o_ref[0] = o.astype(o_ref.dtype)


def _linattn_kernel(q_ref, k_ref, v_ref, o_ref, *, scale):
    """lucidrains LinearAttention in (N, D) layout: q softmax over D (lanes),
    k softmax over N (sublanes); one (batch*head) per grid step."""
    q = q_ref[0].astype(jnp.float32)                       # (Nq, D)
    k = k_ref[0].astype(jnp.float32)                       # (Nk, D)
    v = v_ref[0]                                           # (Nk, D) bf16
    qm = jnp.max(q, axis=-1, keepdims=True)
    qe = jnp.exp(q - qm)
    q = (qe / jnp.sum(qe, axis=-1, keepdims=True)) * scale
    km = jnp.max(k, axis=0, keepdims=True)
    ke = jnp.exp(k - km)
    k = ke / jnp.sum(ke, axis=0, keepdims=True)
    # ctx[d, e] = sum_n k[n, d] * v[n, e]  (transposed-LHS MXU matmul)
    ctx = jax.lax.dot_general(k.astype(ACT_DTYPE), v, (((0,), (0,)), ((), ())),
                              preferred_element_type=jnp.float32)   # (D, D)
    out = jnp.dot(q.astype(ACT_DTYPE), ctx.astype(ACT_DTYPE),
                  preferred_element_type=jnp.float32)                # (Nq, D)
    o_ref[0] = out.astype(o_ref.dtype)


# ----------------------------------------------------------------------------
# Pallas wrappers
# ----------------------------------------------------------------------------
def pallas_matmul(a, b, bias=None, out_dtype=ACT_DTYPE):
    """(M,K)@(K,N)+bias with bf16 operands, f32 accumulation. No pad/slice:
    tiles divide the dims or are full-dim blocks."""
    M, K = a.shape
    K2, N = b.shape
    assert K == K2
    if bias is None:
        bias = jnp.zeros((N,), jnp.float32)
    bias = bias.astype(jnp.float32).reshape(1, N)
    tm = _tile(M, 256, 8)
    tn = _tile(N, 256, 128)
    tk = _tile(K, 2048, 128)
    grid = (M // tm, N // tn, K // tk)
    return pl.pallas_call(
        _mm_bias_kernel,
        out_shape=jax.ShapeDtypeStruct((M, N), out_dtype),
        grid_spec=pltpu.PrefetchScalarGridSpec(
            num_scalar_prefetch=0,
            grid=grid,
            in_specs=[pl.BlockSpec((tm, tk), lambda i, j, k: (i, k)),
                      pl.BlockSpec((tk, tn), lambda i, j, k: (k, j)),
                      pl.BlockSpec((1, tn), lambda i, j, k: (0, j))],
            out_specs=pl.BlockSpec((tm, tn), lambda i, j, k: (i, j)),
            scratch_shapes=[pltpu.VMEM((tm, tn), jnp.float32)]),
        compiler_params=pltpu.CompilerParams(
            dimension_semantics=("parallel", "parallel", "arbitrary")),
    )(a, b, bias)


def rmsnorm_matmul(x, g, w, out_dtype=ACT_DTYPE):
    """RMSNorm(x) @ w (fused), used for the bias-free to_qkv 1x1 conv."""
    M, C = x.shape
    C2, N = w.shape
    assert C == C2
    tm = _tile(M, 256, 8)
    tn = _tile(N, 256, 128)
    return pl.pallas_call(
        partial(_rms_mm_kernel, rms_scale=float(C) ** 0.5),
        out_shape=jax.ShapeDtypeStruct((M, N), out_dtype),
        grid=(M // tm, N // tn),
        in_specs=[pl.BlockSpec((tm, C), lambda i, j: (i, 0)),
                  pl.BlockSpec((1, C), lambda i, j: (0, 0)),
                  pl.BlockSpec((C, tn), lambda i, j: (0, j))],
        out_specs=pl.BlockSpec((tm, tn), lambda i, j: (i, j)),
        compiler_params=pltpu.CompilerParams(
            dimension_semantics=("parallel", "parallel")),
    )(x, g.reshape(1, C).astype(jnp.float32), w)


def rmsnorm(x, g, out_dtype=ACT_DTYPE):
    """Standalone RMSNorm over the channel (last) axis; gridded over rows."""
    shp = x.shape
    C = shp[-1]
    x2 = x.reshape(-1, C)
    M = x2.shape[0]
    tm = _tile(M, 256, 8)
    out = pl.pallas_call(
        partial(_rms_kernel, rms_scale=float(C) ** 0.5),
        out_shape=jax.ShapeDtypeStruct((M, C), out_dtype),
        grid=(M // tm,),
        in_specs=[pl.BlockSpec((tm, C), lambda i: (i, 0)),
                  pl.BlockSpec((1, C), lambda i: (0, 0))],
        out_specs=pl.BlockSpec((tm, C), lambda i: (i, 0)),
        compiler_params=pltpu.CompilerParams(dimension_semantics=("parallel",)),
    )(x2, g.reshape(1, C).astype(jnp.float32))
    return out.reshape(shp)


def norm_silu(x3, g, out_dtype=ACT_DTYPE):
    """RMSNorm -> SiLU (no scale/shift modulation)."""
    B, HW, C = x3.shape
    x2 = x3.reshape(B * HW, C)
    M = x2.shape[0]
    tm = _tile(M, 256, 8)
    out = pl.pallas_call(
        partial(_norm_silu_kernel, rms_scale=float(C) ** 0.5),
        out_shape=jax.ShapeDtypeStruct((M, C), out_dtype),
        grid=(M // tm,),
        in_specs=[pl.BlockSpec((tm, C), lambda i: (i, 0)),
                  pl.BlockSpec((1, C), lambda i: (0, 0))],
        out_specs=pl.BlockSpec((tm, C), lambda i: (i, 0)),
        compiler_params=pltpu.CompilerParams(dimension_semantics=("parallel",)),
    )(x2, g.reshape(1, C).astype(jnp.float32))
    return out.reshape(B, HW, C)


def norm_mod_silu(x3, g, scale, shift, out_dtype=ACT_DTYPE):
    """RMSNorm -> x*(scale+1)+shift -> SiLU, per-batch scale/shift."""
    B, HW, C = x3.shape
    thw = _tile(HW, 256, 8)
    return pl.pallas_call(
        partial(_norm_mod_silu_kernel, rms_scale=float(C) ** 0.5),
        out_shape=jax.ShapeDtypeStruct((B, HW, C), out_dtype),
        grid=(B, HW // thw),
        in_specs=[pl.BlockSpec((1, thw, C), lambda b, j: (b, j, 0)),
                  pl.BlockSpec((1, 1, C), lambda b, j: (0, 0, 0)),
                  pl.BlockSpec((1, 1, C), lambda b, j: (b, 0, 0)),
                  pl.BlockSpec((1, 1, C), lambda b, j: (b, 0, 0))],
        out_specs=pl.BlockSpec((1, thw, C), lambda b, j: (b, j, 0)),
        compiler_params=pltpu.CompilerParams(
            dimension_semantics=("parallel", "parallel")),
    )(x3, g.reshape(1, 1, C).astype(jnp.float32),
      scale.astype(jnp.float32).reshape(B, 1, C),
      shift.astype(jnp.float32).reshape(B, 1, C))


def _bh_attention_call(kernel, q, k, v, scale):
    BH, Nq, dh = q.shape
    Nk = k.shape[1]
    return pl.pallas_call(
        partial(kernel, scale=scale),
        out_shape=jax.ShapeDtypeStruct((BH, Nq, dh), ACT_DTYPE),
        grid=(BH,),
        in_specs=[pl.BlockSpec((1, Nq, dh), lambda b: (b, 0, 0)),
                  pl.BlockSpec((1, Nk, dh), lambda b: (b, 0, 0)),
                  pl.BlockSpec((1, Nk, dh), lambda b: (b, 0, 0))],
        out_specs=pl.BlockSpec((1, Nq, dh), lambda b: (b, 0, 0)),
        compiler_params=pltpu.CompilerParams(dimension_semantics=("parallel",)),
    )(q, k, v)


# ----------------------------------------------------------------------------
# Parameter factory (deterministic synthetic weights, NumPy -> no init compiles)
# ----------------------------------------------------------------------------
class ParamFactory:
    def __init__(self, seed=0):
        self._rng = np.random.default_rng(seed)

    def normal(self, shape, scale=0.02, dtype=ACT_DTYPE):
        arr = self._rng.standard_normal(size=shape, dtype=np.float32) * scale
        return jnp.asarray(arr, dtype=dtype)

    @staticmethod
    def zeros(shape, dtype=jnp.float32):
        return jnp.zeros(shape, dtype)

    @staticmethod
    def ones(shape, dtype=jnp.float32):
        return jnp.ones(shape, dtype)


def make_conv(pf, cin, cout, k, bias=True):
    # conv weight pre-flattened: (k*k*cin, cout), tap-major (dy, dx)
    return dict(w=pf.normal((k * k * cin, cout)),
                b=pf.zeros((cout,)) if bias else None, k=k)


def make_linear(pf, din, dout):
    return dict(w=pf.normal((din, dout)), b=pf.zeros((dout,)))


def make_block(pf, cin, cout):
    return dict(conv=make_conv(pf, cin, cout, 3), g=pf.ones((cout,)))


def make_resblock(pf, cin, cout, time_dim):
    return dict(mlp=make_linear(pf, time_dim, cout * 2),
                block1=make_block(pf, cin, cout),
                block2=make_block(pf, cout, cout),
                res=make_conv(pf, cin, cout, 1) if cin != cout else None)


def make_attn(pf, dim, heads=4, dim_head=32, num_mem_kv=4, linear=False):
    hidden = heads * dim_head
    d = dict(norm_g=pf.ones((dim,)),
             to_qkv=make_conv(pf, dim, hidden * 3, 1, bias=False),
             to_out=make_conv(pf, hidden, dim, 1),
             # mem_kv stored token-major (heads, n_mem, dim_head) for both variants
             mem_kv=pf.normal((2, heads, num_mem_kv, dim_head), scale=1.0),
             heads=heads, dim_head=dim_head, linear=linear)
    if linear:
        d['out_norm_g'] = pf.ones((dim,))
    return d


def build_unet_params(seed=0, dim=64, dim_mults=(1, 2, 4, 4), channels=1,
                      attn_heads=4, attn_dim_head=32):
    pf = ParamFactory(seed)
    init_dim = dim
    dims = [init_dim] + [dim * m for m in dim_mults]
    in_out = list(zip(dims[:-1], dims[1:]))
    time_dim = dim * 4
    n = len(in_out)
    full_attn = tuple([False] * (n - 1) + [True])

    params = dict(
        dim=dim, channels=channels, time_dim=time_dim,
        init_conv=make_conv(pf, channels, init_dim, 7),
        time_mlp=dict(l1=make_linear(pf, dim, time_dim),
                      l2=make_linear(pf, time_dim, time_dim)),
        downs=[], ups=[],
    )
    for ind, (din, dout) in enumerate(in_out):
        is_last = ind == n - 1
        params['downs'].append(dict(
            block1=make_resblock(pf, din, din, time_dim),
            block2=make_resblock(pf, din, din, time_dim),
            attn=make_attn(pf, din, attn_heads, attn_dim_head,
                           linear=not full_attn[ind]),
            down=(make_conv(pf, din, dout, 3) if is_last
                  else make_conv(pf, din * 4, dout, 1)),
            down_is_conv=is_last,
        ))
    mid_dim = dims[-1]
    params['mid_block1'] = make_resblock(pf, mid_dim, mid_dim, time_dim)
    params['mid_attn'] = make_attn(pf, mid_dim, attn_heads, attn_dim_head, linear=False)
    params['mid_block2'] = make_resblock(pf, mid_dim, mid_dim, time_dim)
    for ind, ((din, dout), fa) in enumerate(zip(reversed(in_out), reversed(full_attn))):
        is_last = ind == n - 1
        params['ups'].append(dict(
            block1=make_resblock(pf, dout + din, dout, time_dim),
            block2=make_resblock(pf, dout + din, dout, time_dim),
            attn=make_attn(pf, dout, attn_heads, attn_dim_head, linear=not fa),
            up=make_conv(pf, dout, din, 3),
            up_is_conv=is_last,
        ))
    params['final_res'] = make_resblock(pf, init_dim * 2, init_dim, time_dim)
    params['final_conv'] = make_conv(pf, init_dim, channels, 1)
    return params


# ----------------------------------------------------------------------------
# Layers (glue in JAX, compute in Pallas)
# ----------------------------------------------------------------------------
def conv2d(x, p, out_dtype=ACT_DTYPE):
    """Same-padded stride-1 conv, NHWC. k>1 convs go through im2col (slice+concat
    is pure layout glue at these sizes) into the fused-bias MXU matmul."""
    B, H, W, C = x.shape
    k = p['k']
    if k == 1:
        y = pallas_matmul(x.reshape(B * H * W, C), p['w'], p['b'], out_dtype=out_dtype)
        return y.reshape(B, H, W, -1)
    pad = k // 2
    xp = jnp.pad(x, ((0, 0), (pad, pad), (pad, pad), (0, 0)))
    patches = [xp[:, dy:dy + H, dx:dx + W, :] for dy in range(k) for dx in range(k)]
    cols = jnp.concatenate(patches, axis=-1).reshape(B * H * W, k * k * C)
    y = pallas_matmul(cols, p['w'], p['b'], out_dtype=out_dtype)
    return y.reshape(B, H, W, -1)


def resblock_forward(x, p, temb):
    te = pallas_matmul(jax.nn.silu(temb).astype(ACT_DTYPE),
                       p['mlp']['w'], p['mlp']['b'], out_dtype=jnp.float32)
    c_out = te.shape[-1] // 2
    scale, shift = te[:, :c_out], te[:, c_out:]

    h = conv2d(x, p['block1']['conv'])
    B, H, W, C = h.shape
    h = norm_mod_silu(h.reshape(B, H * W, C), p['block1']['g'], scale, shift)
    h = h.reshape(B, H, W, C)

    h = conv2d(h, p['block2']['conv'])
    h = norm_silu(h.reshape(B, H * W, C), p['block2']['g']).reshape(B, H, W, C)

    res = conv2d(x, p['res']) if p['res'] is not None else x
    return h + res


def _split_heads(t, B, HW, heads, dh):
    # 'b n (h c) -> (b h) n c'
    return t.reshape(B, HW, heads, dh).transpose(0, 2, 1, 3).reshape(B * heads, HW, dh)


def _merge_heads(t, B, HW, heads, dh):
    # '(b h) n c -> (b n) (h c)'
    return t.reshape(B, heads, HW, dh).transpose(0, 2, 1, 3).reshape(B * HW, heads * dh)


def _qkv_with_mem(x, p):
    B, H, W, C = x.shape
    heads, dh = p['heads'], p['dim_head']
    hidden = heads * dh
    HW = H * W
    # RMSNorm fused into the 1x1 to_qkv matmul
    qkv = rmsnorm_matmul(x.reshape(B * HW, C), p['norm_g'], p['to_qkv']['w'])
    q, k, v = jnp.split(qkv.reshape(B, HW, 3 * hidden), 3, axis=-1)
    q = _split_heads(q, B, HW, heads, dh)
    k = _split_heads(k, B, HW, heads, dh)
    v = _split_heads(v, B, HW, heads, dh)
    nmem = p['mem_kv'].shape[2]
    mk = jnp.broadcast_to(p['mem_kv'][0][None], (B, heads, nmem, dh)
                          ).reshape(B * heads, nmem, dh).astype(k.dtype)
    mv = jnp.broadcast_to(p['mem_kv'][1][None], (B, heads, nmem, dh)
                          ).reshape(B * heads, nmem, dh).astype(v.dtype)
    k = jnp.concatenate([mk, k], axis=1)
    v = jnp.concatenate([mv, v], axis=1)
    return q, k, v


def attention_forward(x, p):
    B, H, W, C = x.shape
    heads, dh = p['heads'], p['dim_head']
    HW = H * W
    q, k, v = _qkv_with_mem(x, p)
    out = _bh_attention_call(_attn_kernel, q, k, v, dh ** -0.5)
    out = _merge_heads(out, B, HW, heads, dh)
    y = pallas_matmul(out, p['to_out']['w'], p['to_out']['b'])
    return y.reshape(B, H, W, C)


def linear_attention_forward(x, p):
    B, H, W, C = x.shape
    heads, dh = p['heads'], p['dim_head']
    HW = H * W
    q, k, v = _qkv_with_mem(x, p)
    out = _bh_attention_call(_linattn_kernel, q, k, v, dh ** -0.5)
    out = _merge_heads(out, B, HW, heads, dh)
    y = pallas_matmul(out, p['to_out']['w'], p['to_out']['b'])
    y = rmsnorm(y, p['out_norm_g'])
    return y.reshape(B, H, W, C)


def attn_dispatch(x, p):
    return linear_attention_forward(x, p) if p['linear'] else attention_forward(x, p)


def downsample_forward(x, p):
    # 'b c (h p1) (w p2) -> b (c p1 p2) h w' then 1x1 conv (channel order c, p1, p2)
    B, H, W, C = x.shape
    x = x.reshape(B, H // 2, 2, W // 2, 2, C)
    x = x.transpose(0, 1, 3, 5, 2, 4).reshape(B, H // 2, W // 2, C * 4)
    return conv2d(x, p)


def upsample_forward(x, p):
    x = jnp.repeat(jnp.repeat(x, 2, axis=1), 2, axis=2)   # nearest x2
    return conv2d(x, p)


def sinusoidal_emb(t, dim, theta=10000.0):
    half = dim // 2
    emb = math.log(theta) / (half - 1)
    freqs = jnp.exp(jnp.arange(half, dtype=jnp.float32) * -emb)
    arg = t.astype(jnp.float32)[:, None] * freqs[None, :]
    return jnp.concatenate([jnp.sin(arg), jnp.cos(arg)], axis=-1)


# ----------------------------------------------------------------------------
# DDPMUnet forward (parametrization='x0' -> forward just returns unet(xt, t))
# ----------------------------------------------------------------------------
def ddpm_unet_forward(params, xt_nchw, t):
    # input NCHW (PyTorch convention) -> internal NHWC bf16 -> output NCHW f32
    x = jnp.transpose(xt_nchw, (0, 2, 3, 1)).astype(ACT_DTYPE)
    x = conv2d(x, params['init_conv'])
    r = x

    temb = sinusoidal_emb(t, params['dim'])
    temb = pallas_matmul(temb.astype(ACT_DTYPE), params['time_mlp']['l1']['w'],
                         params['time_mlp']['l1']['b'], out_dtype=jnp.float32)
    # TODO(synk): exact-erf GELU on the tiny (B, 4*dim) time embedding kept in plain JAX.
    temb = jax.nn.gelu(temb, approximate=False)
    temb = pallas_matmul(temb.astype(ACT_DTYPE), params['time_mlp']['l2']['w'],
                         params['time_mlp']['l2']['b'], out_dtype=jnp.float32)

    hs = []
    for stage in params['downs']:
        x = resblock_forward(x, stage['block1'], temb)
        hs.append(x)
        x = resblock_forward(x, stage['block2'], temb)
        x = attn_dispatch(x, stage['attn']) + x
        hs.append(x)
        x = conv2d(x, stage['down']) if stage['down_is_conv'] else downsample_forward(x, stage['down'])

    x = resblock_forward(x, params['mid_block1'], temb)
    x = attention_forward(x, params['mid_attn']) + x
    x = resblock_forward(x, params['mid_block2'], temb)

    for stage in params['ups']:
        x = jnp.concatenate([x, hs.pop()], axis=-1)
        x = resblock_forward(x, stage['block1'], temb)
        x = jnp.concatenate([x, hs.pop()], axis=-1)
        x = resblock_forward(x, stage['block2'], temb)
        x = attn_dispatch(x, stage['attn']) + x
        x = conv2d(x, stage['up']) if stage['up_is_conv'] else upsample_forward(x, stage['up'])

    x = jnp.concatenate([x, r], axis=-1)
    x = resblock_forward(x, params['final_res'], temb)
    x = conv2d(x, params['final_conv'], out_dtype=jnp.float32)
    # TODO(synk): self-conditioning path (x_self_cond, default False) is omitted.
    return jnp.transpose(x, (0, 3, 1, 2))


if __name__ == "__main__":
    key = jax.random.PRNGKey(0)
    kx, kt = jax.random.split(key)
    B, H, W = 2, 16, 16
    xt = jax.random.normal(kx, (B, 1, H, W), jnp.float32)       # NCHW, channels=1
    t = jax.random.randint(kt, (B,), 0, 1000).astype(jnp.float32)

    params = build_unet_params(seed=0)
    out = ddpm_unet_forward(params, xt, t)
    out = jax.block_until_ready(out)

    assert out.shape == (B, 1, H, W), out.shape
    assert bool(jnp.all(jnp.isfinite(out)))
    print("KERNEL_OK")
</pallas_src>

<mosaic_0001>
module attributes {stable_mosaic.version = 11 : i64} {
  func.func @_mm_bias_kernel(%arg0: i32, %arg1: i32, %arg2: i32, %arg3: memref<256x49xbf16, #tpu.memory_space<vmem>>, %arg4: memref<49x64xbf16, #tpu.memory_space<vmem>>, %arg5: memref<1x64xf32, #tpu.memory_space<vmem>>, %arg6: memref<256x64xbf16, #tpu.memory_space<vmem>>, %arg7: memref<256x64xf32, #tpu.memory_space<vmem>>) attributes {dimension_semantics = [#tpu.dimension_semantics<parallel>, #tpu.dimension_semantics<parallel>, #tpu.dimension_semantics<arbitrary>], iteration_bounds = array<i64: 2, 1, 1>, scalar_prefetch = 0 : i64, scratch_operands = 1 : i64, tpu.core_type = #tpu.core_type<tc>, window_params = [{transform_indices = @transform_0, window_bounds = array<i64: 256, 49>}, {transform_indices = @transform_1, window_bounds = array<i64: 49, 64>}, {transform_indices = @transform_2, window_bounds = array<i64: 1, 64>}, {transform_indices = @transform_3, window_bounds = array<i64: 256, 64>}]} {
    %c0_i32 = arith.constant 0 : i32
    %0 = arith.cmpi eq, %arg2, %c0_i32 : i32
    %1 = arith.extui %0 : i1 to i32
    %c0_i32_0 = arith.constant 0 : i32
    %2 = arith.cmpi ne, %1, %c0_i32_0 : i32
    scf.if %2 {
      %cst_10 = arith.constant 0.000000e+00 : f32
      %12 = vector.broadcast %cst_10 : f32 to vector<256x64xf32>
      %c0_11 = arith.constant 0 : index
      %c0_12 = arith.constant 0 : index
      %13 = vector.load %arg7[%c0_11, %c0_12] : memref<256x64xf32, #tpu.memory_space<vmem>>, vector<256x64xf32>
      tpu.vector_store %arg7[%c0_11, %c0_12], %12 {strides = array<i32>} : memref<256x64xf32, #tpu.memory_space<vmem>>, vector<256x64xf32>,
    } else {
    }
    %c0 = arith.constant 0 : index
    %c0_1 = arith.constant 0 : index
    %3 = vector.load %arg7[%c0, %c0_1] : memref<256x64xf32, #tpu.memory_space<vmem>>, vector<256x64xf32>
    %c0_2 = arith.constant 0 : index
    %c0_3 = arith.constant 0 : index
    %4 = vector.load %arg3[%c0_2, %c0_3] : memref<256x49xbf16, #tpu.memory_space<vmem>>, vector<256x49xbf16>
    %c0_4 = arith.constant 0 : index
    %c0_5 = arith.constant 0 : index
    %5 = vector.load %arg4[%c0_4, %c0_5] : memref<49x64xbf16, #tpu.memory_space<vmem>>, vector<49x64xbf16>
    %cst = arith.constant dense<0.000000e+00> : vector<256x64xf32>
    %6 = tpu.matmul %4, %5, %cst {dimension_numbers = #tpu.dot_dimension_numbers<[1], [0], [0], [1], [0, 0, 1, 1], [], []>} : vector<256x49xbf16>, vector<49x64xbf16>, vector<256x64xf32> -> vector<256x64xf32>
    %7 = arith.addf %3, %6 : vector<256x64xf32>
    %c0_6 = arith.constant 0 : index
    %c0_7 = arith.constant 0 : index
    %8 = vector.load %arg7[%c0_6, %c0_7] : memref<256x64xf32, #tpu.memory_space<vmem>>, vector<256x64xf32>
    tpu.vector_store %arg7[%c0_6, %c0_7], %7 {strides = array<i32>} : memref<256x64xf32, #tpu.memory_space<vmem>>, vector<256x64xf32>,
    %c0_i32_8 = arith.constant 0 : i32
    %9 = arith.cmpi eq, %arg2, %c0_i32_8 : i32
    %10 = arith.extui %9 : i1 to i32
    %c0_i32_9 = arith.constant 0 : i32
    %11 = arith.cmpi ne, %10, %c0_i32_9 : i32
    scf.if %11 {
      %c0_10 = arith.constant 0 : index
      %c0_11 = arith.constant 0 : index
      %12 = vector.load %arg7[%c0_10, %c0_11] : memref<256x64xf32, #tpu.memory_space<vmem>>, vector<256x64xf32>
      %c0_12 = arith.constant 0 : index
      %c0_13 = arith.constant 0 : index
      %13 = vector.load %arg5[%c0_12, %c0_13] : memref<1x64xf32, #tpu.memory_space<vmem>>, vector<1x64xf32>
      %14 = vector.broadcast %13 : vector<1x64xf32> to vector<256x64xf32>
      %15 = arith.addf %12, %14 : vector<256x64xf32>
      %16 = arith.truncf %15 : vector<256x64xf32> to vector<256x64xbf16>
      %c0_14 = arith.constant 0 : index
      %c0_15 = arith.constant 0 : index
      %17 = vector.load %arg6[%c0_14, %c0_15] : memref<256x64xbf16, #tpu.memory_space<vmem>>, vector<256x64xbf16>
      tpu.vector_store %arg6[%c0_14, %c0_15], %16 {strides = array<i32>} : memref<256x64xbf16, #tpu.memory_space<vmem>>, vector<256x64xbf16>,
    } else {
    }
    return
  }
  func.func @transform_0(%arg0: i32, %arg1: i32, %arg2: i32) -> (i32, i32) {
    %c0_i32 = arith.constant 0 : i32
    return %arg0, %arg2 : i32, i32
  }
  func.func @transform_1(%arg0: i32, %arg1: i32, %arg2: i32) -> (i32, i32) {
    %c0_i32 = arith.constant 0 : i32
    return %arg2, %arg1 : i32, i32
  }
  func.func @transform_2(%arg0: i32, %arg1: i32, %arg2: i32) -> (i32, i32) {
    %c0_i32 = arith.constant 0 : i32
    %c0_i32_0 = arith.constant 0 : i32
    return %c0_i32, %arg1 : i32, i32
  }
  func.func @transform_3(%arg0: i32, %arg1: i32, %arg2: i32) -> (i32, i32) {
    %c0_i32 = arith.constant 0 : i32
    return %arg0, %arg1 : i32, i32
  }
}

</mosaic_0001>

<llo_original>
// kernel: tpu_custom_call.1
$region0: #{tpu_custom_call.1}
  #allocation0 [shape = 'u32[]', space=smem, size = 0x4, offset = 0x4, fixed_abs, tag = 'smem constant byte address 0x4 - core index']
  #allocation1 [shape = 'u32[72,128]{1,0:T(1,128)}', space=vmem, size = 0x9000, scoped, tag = 'internal scratch']
  #allocation2 [shape = 'f32[256,64]{1,0:T(8,128)}', space=vmem, size = 0x20000, scoped, tag = 'scratch operand']
  %s0 = inlined_call_operand.vmem [shape: bf16[512,49], index: 0, kind: input, shape index: {}]
  %s1 = inlined_call_operand.vmem [shape: bf16[49,64], index: 1, kind: input, shape index: {}]
  %s2 = inlined_call_operand.vmem [shape: f32[1,64], index: 2, kind: input, shape index: {}]
  %s3 = inlined_call_operand.vmem [shape: bf16[512,64], index: 3, kind: output, shape index: {}]
  %s4 = sld [smem:[#allocation0]]
  $region53: #{tpu_custom_call.1} parent=0
    _
  %s6 = ssub.s32 1, %s4
  %s7 = scalar_select 0, %s6, %s4
  loop: start=0, step=1, limit=4
  $region2: #{tpu_custom_call.1} parent=0 // loop_pre_header
    _
  $region3: #{tpu_custom_call.1} parent=0 // loop_header
    %s9 = sphi 0, %s13
    %p10 = scmp.ge.s32.totalorder %s9, 4
    %s16 = sphi 0, %s35
    %s17 = sphi 0, %s31
    %s18 = sphi 0, %s27
    %s19 = sphi 0, %s16
    %s20 = sphi 0, %s17
    %s21 = sphi 0, %s18
    %s22 = sphi 0, %s19
    %s23 = sphi 0, %s20
    %s24 = sphi 0, %s21
    %s40 = sphi 0, %s42
    %s43 = sphi 0, %s40
    %s44 = sphi 0, %s43
    %s60 = sphi 0, %s44
    %s68 = sphi 0, %s70
    %s71 = sphi 0, %s68
    %s72 = sphi 0, %s71
    %s88 = sphi 0, %s72
    %s94 = sphi 0, %s96
    %s97 = sphi 0, %s94
    %s98 = sphi 0, %s97
    %s114 = sphi 0, %s98
    %s122 = sphi 0, %s124
    %s125 = sphi 0, %s122
    %s126 = sphi 0, %s125
    %s142 = sphi 0, %s126
  $region4: #{tpu_custom_call.1} parent=0 // loop_header_branch
    %12 = sbr.rel (%p10) target = $region8
  $region5: #{tpu_custom_call.1} parent=0 // loop_body
    %s14 = ssub.s32 %s9, 1
    %s15 = ssub.s32 %s9, 2
    %s25 = sadd.s32 1, %s18
    %p26 = scmp.ge.s32.totalorder %s25, 1
    %s27 = scalar_select %p26, 0, %s25
    %s28 = sadd.s32 1, %s17
    %s29 = scalar_select %p26, %s28, %s17
    %p30 = scmp.ge.s32.totalorder %s29, 1
    %s31 = scalar_select %p30, 0, %s29
    %s32 = sadd.s32 1, %s16
    %s33 = scalar_select %p30, %s32, %s16
    %p34 = scmp.ge.s32.totalorder %s33, 2
    %s35 = scalar_select %p34, 0, %s33
    %s36 = ssub.s32 %s16, %s35
    %s37 = ssub.s32 %s18, %s27
    %s38 = sor.u32 %s36, %s37
    %p39 = scmp.eq.s32.totalorder %s38, 0
    %s41 = sadd.s32 %s40, 1
    %s42 = scalar_select %p39, %s40, %s41
    %p45 = pneg %p39
    %p46 = scmp.eq.s32.totalorder %s9, 1
    %p47 = por %p45, %p46
    %p48 = scmp.ne.s32.totalorder %s40, %s43
    %p49 = scmp.eq.s32.totalorder %s9, 0
    %p50 = por %p48, %p49
    %p51 = scmp.ne.s32.totalorder %s40, %s43
    %p52 = scmp.eq.s32.totalorder %s14, 1
    %p53 = por %p51, %p52
    %p54 = scmp.ne.s32.totalorder %s43, %s44
    %p55 = scmp.eq.s32.totalorder %s14, 0
    %p56 = por %p54, %p55
    %p57 = scmp.ne.s32.totalorder %s43, %s44
    %p58 = scmp.eq.s32.totalorder %s15, 1
    %p59 = por %p57, %p58
    %p61 = scmp.ne.s32.totalorder %s44, %s60
    %p62 = scmp.eq.s32.totalorder %s15, 0
    %p63 = por %p61, %p62
    %s64 = ssub.s32 %s18, %s27
    %s65 = ssub.s32 %s17, %s31
    %s66 = sor.u32 %s64, %s65
    %p67 = scmp.eq.s32.totalorder %s66, 0
    %s69 = sadd.s32 %s68, 1
    %s70 = scalar_select %p67, %s68, %s69
    %p73 = pneg %p67
    %p74 = scmp.eq.s32.totalorder %s9, 1
    %p75 = por %p73, %p74
    %p76 = scmp.ne.s32.totalorder %s68, %s71
    %p77 = scmp.eq.s32.totalorder %s9, 0
    %p78 = por %p76, %p77
    %p79 = scmp.ne.s32.totalorder %s68, %s71
    %p80 = scmp.eq.s32.totalorder %s14, 1
    %p81 = por %p79, %p80
    %p82 = scmp.ne.s32.totalorder %s71, %s72
    %p83 = scmp.eq.s32.totalorder %s14, 0
    %p84 = por %p82, %p83
    %p85 = scmp.ne.s32.totalorder %s71, %s72
    %p86 = scmp.eq.s32.totalorder %s15, 1
    %p87 = por %p85, %p86
    %p89 = scmp.ne.s32.totalorder %s72, %s88
    %p90 = scmp.eq.s32.totalorder %s15, 0
    %p91 = por %p89, %p90
    %s92 = ssub.s32 %s17, %s31
    %p93 = scmp.eq.s32.totalorder %s92, 0
    %s95 = sadd.s32 %s94, 1
    %s96 = scalar_select %p93, %s94, %s95
    %p99 = pneg %p93
    %p100 = scmp.eq.s32.totalorder %s9, 1
    %p101 = por %p99, %p100
    %p102 = scmp.ne.s32.totalorder %s94, %s97
    %p103 = scmp.eq.s32.totalorder %s9, 0
    %p104 = por %p102, %p103
    %p105 = scmp.ne.s32.totalorder %s94, %s97
    %p106 = scmp.eq.s32.totalorder %s14, 1
    %p107 = por %p105, %p106
    %p108 = scmp.ne.s32.totalorder %s97, %s98
    %p109 = scmp.eq.s32.totalorder %s14, 0
    %p110 = por %p108, %p109
    %p111 = scmp.ne.s32.totalorder %s97, %s98
    %p112 = scmp.eq.s32.totalorder %s15, 1
    %p113 = por %p111, %p112
    %p115 = scmp.ne.s32.totalorder %s98, %s114
    %p116 = scmp.eq.s32.totalorder %s15, 0
    %p117 = por %p115, %p116
    %s118 = ssub.s32 %s16, %s35
    %s119 = ssub.s32 %s17, %s31
    %s120 = sor.u32 %s118, %s119
    %p121 = scmp.eq.s32.totalorder %s120, 0
    %s123 = sadd.s32 %s122, 1
    %s124 = scalar_select %p121, %s122, %s123
    %p127 = pneg %p121
    %p128 = scmp.eq.s32.totalorder %s9, 1
    %p129 = por %p127, %p128
    %p130 = scmp.ne.s32.totalorder %s122, %s125
    %p131 = scmp.eq.s32.totalorder %s9, 0
    %p132 = por %p130, %p131
    %p133 = scmp.ne.s32.totalorder %s122, %s125
    %p134 = scmp.eq.s32.totalorder %s14, 1
    %p135 = por %p133, %p134
    %p136 = scmp.ne.s32.totalorder %s125, %s126
    %p137 = scmp.eq.s32.totalorder %s14, 0
    %p138 = por %p136, %p137
    %p139 = scmp.ne.s32.totalorder %s125, %s126
    %p140 = scmp.eq.s32.totalorder %s15, 1
    %p141 = por %p139, %p140
    %p143 = scmp.ne.s32.totalorder %s126, %s142
    %p144 = scmp.eq.s32.totalorder %s15, 0
    %p145 = por %p143, %p144
    %p146 = scmp.le.s32.totalorder 1, %s9
    %p147 = scmp.lt.s32.totalorder %s9, 3
    %p148 = pnand %p146, %p147
    %p149 = pneg %p148
    // Predicated region
    $region9: #{tpu_custom_call.1} parent=5 // pred_check
      _
    $region10: #{tpu_custom_call.1} parent=5 // pred_check_branch
      %151 = sbr.rel (%p148) target = $region12
    $region11: #{tpu_custom_call.1} parent=5 // pred_region
      %s152 = ssub.s32 %s9, 1
      // Predicated region
      $region13: #{tpu_custom_call.1} parent=11 // pred_check
        %p153 = pneg %p84
      $region14: #{tpu_custom_call.1} parent=11 // pred_check_branch
        %155 = sbr.rel (%p153) target = $region16
      $region15: #{tpu_custom_call.1} parent=11 // pred_region
        %s156 = smul.u32 7, %s21
        %p157 = scmp.lt.s32.totalorder %s156, 6
        %s158 = scalar_select %p157, %s156, 6
        %p159 = scmp.lt.s32.totalorder %s20, 0
        %s160 = scalar_select %p159, %s20, 0
        %s161 = sadd.s32 %s160, %s158
        %s162 = smul.addr %s161, 4
        %s163 = scalar_lea.vmem %s1, %s162
        %s164 = smul.u32 7, %s21
      $region16: #{tpu_custom_call.1} parent=11 // pred_fallthru
        _
      // Predicated region
      $region17: #{tpu_custom_call.1} parent=11 // pred_check
        %p165 = pneg %p110
      $region18: #{tpu_custom_call.1} parent=11 // pred_check_branch
        %167 = sbr.rel (%p165) target = $region20
      $region19: #{tpu_custom_call.1} parent=11 // pred_region
        %p168 = scmp.lt.s32.totalorder %s20, 0
        %s169 = scalar_select %p168, %s20, 0
        %s170 = scalar_lea.vmem %s2, %s169
      $region20: #{tpu_custom_call.1} parent=11 // pred_fallthru
        _
    $region12: #{tpu_custom_call.1} parent=5 // pred_fallthru
      _
    %p171 = scmp.lt.s32.totalorder %s9, 2
    // Predicated region
    $region21: #{tpu_custom_call.1} parent=5 // pred_check
      %p172 = pneg %p171
    $region22: #{tpu_custom_call.1} parent=5 // pred_check_branch
      %174 = sbr.rel (%p172) target = $region24
    $region23: #{tpu_custom_call.1} parent=5 // pred_region
      // Predicated region
      $region25: #{tpu_custom_call.1} parent=23 // pred_check
        %p175 = pneg %p50
      $region26: #{tpu_custom_call.1} parent=23 // pred_check_branch
        %177 = sbr.rel (%p175) target = $region28
      $region27: #{tpu_custom_call.1} parent=23 // pred_region
        %s178 = smul.u32 32, %s16
        %p179 = scmp.lt.s32.totalorder %s178, 63
        %s180 = scalar_select %p179, %s178, 63
        %p181 = scmp.lt.s32.totalorder %s18, 0
        %s182 = scalar_select %p181, %s18, 0
        %s183 = sadd.s32 %s182, %s180
        %s184 = smul.addr %s183, 4
        %s185 = scalar_lea.vmem %s0, %s184
        %s186 = smul.u32 32, %s16
      $region28: #{tpu_custom_call.1} parent=23 // pred_fallthru
        _
    $region24: #{tpu_custom_call.1} parent=5 // pred_fallthru
      _
    %p187 = scmp.le.s32.totalorder 1, %s9
    %p188 = scmp.lt.s32.totalorder %s9, 3
    %p189 = pnand %p187, %p188
    %p190 = pneg %p189
    // Predicated region
    $region29: #{tpu_custom_call.1} parent=5 // pred_check
      _
    $region30: #{tpu_custom_call.1} parent=5 // pred_check_branch
      %192 = sbr.rel (%p189) target = $region32
    $region31: #{tpu_custom_call.1} parent=5 // pred_region
      %s193 = ssub.s32 %s9, 1
      %s194 = smul.u32 32, %s19
      %p195 = scmp.lt.s32.totalorder %s194, 63
      %s196 = scalar_select %p195, %s194, 63
      %p197 = scmp.lt.s32.totalorder %s21, 0
      %s198 = scalar_select %p197, %s21, 0
      %s199 = sadd.s32 %s198, %s196
      %s200 = smul.addr %s199, 4
      %s201 = scalar_lea.vmem %s0, %s200
      %p202 = pneg %p56
      %p203 = pneg %p53
      %s204 = smul.u32 7, %s21
      %p205 = scmp.lt.s32.totalorder %s204, 6
      %s206 = scalar_select %p205, %s204, 6
      %p207 = scmp.lt.s32.totalorder %s20, 0
      %s208 = scalar_select %p207, %s20, 0
      %s209 = sadd.s32 %s208, %s206
      %s210 = smul.addr %s209, 4
      %s211 = scalar_lea.vmem %s1, %s210
      %p212 = pneg %p84
      %p213 = pneg %p81
      %p214 = scmp.lt.s32.totalorder %s20, 0
      %s215 = scalar_select %p214, %s20, 0
      %s216 = scalar_lea.vmem %s2, %s215
      %p217 = pneg %p110
      %p218 = pneg %p107
      %p219 = pneg %p138
      %p220 = pneg %p135
      %s221 = smul.u32 32, %s19
      %p222 = scmp.lt.s32.totalorder %s221, 63
      %s223 = scalar_select %p222, %s221, 63
      %p224 = scmp.lt.s32.totalorder %s20, 0
      %s225 = scalar_select %p224, %s20, 0
      %s226 = sadd.s32 %s225, %s223
      %s227 = smul.addr %s226, 4
      %s228 = scalar_lea.vmem %s3, %s227
      %s229 = smul.u32 32, %s19
      %p230 = scmp.lt.s32.totalorder %s229, 63
      %s231 = scalar_select %p230, %s229, 63
      %p232 = scmp.lt.s32.totalorder %s21, 0
      %s233 = scalar_select %p232, %s21, 0
      %s234 = sadd.s32 %s233, %s231
      %s235 = smul.addr %s234, 4
      %s236 = scalar_lea.vmem %s0, %s235
      %s237 = smul.u32 32, %s19
      %s238 = smul.u32 7, %s21
      %p239 = scmp.lt.s32.totalorder %s238, 6
      %s240 = scalar_select %p239, %s238, 6
      %p241 = scmp.lt.s32.totalorder %s20, 0
      %s242 = scalar_select %p241, %s20, 0
      %s243 = sadd.s32 %s242, %s240
      %s244 = smul.addr %s243, 4
      %s245 = scalar_lea.vmem %s1, %s244
      %s246 = smul.u32 7, %s21
      %p247 = scmp.lt.s32.totalorder %s20, 0
      %s248 = scalar_select %p247, %s20, 0
      %s249 = scalar_lea.vmem %s2, %s248
      %s250 = smul.u32 32, %s19
      %p251 = scmp.lt.s32.totalorder %s250, 63
      %s252 = scalar_select %p251, %s250, 63
      %p253 = scmp.lt.s32.totalorder %s20, 0
      %s254 = scalar_select %p253, %s20, 0
      %s255 = sadd.s32 %s254, %s252
      %s256 = smul.addr %s255, 4
      %s257 = scalar_lea.vmem %s3, %s256
      %s258 = smul.u32 32, %s19
      %p260 = scmp.eq.s32.totalorder %s21, 0
      // Predicated region
      $region33: #{tpu_custom_call.1} parent=31 // pred_check
        %p261 = pneg %p260
      $region34: #{tpu_custom_call.1} parent=31 // pred_check_branch
        %263 = sbr.rel (%p261) target = $region36
      $region35: #{tpu_custom_call.1} parent=31 // pred_region
        %vm264 = vcmask 523264
        %265 = vst.msk [vmem:[#allocation2] sm:$0xff] %vm264, 0.0
        %266 = vst.msk [vmem:[#allocation2 + $0x8] sm:$0xff] %vm264, 0.0
        %267 = vst.msk [vmem:[#allocation2 + $0x10] sm:$0xff] %vm264, 0.0
        %268 = vst.msk [vmem:[#allocation2 + $0x18] sm:$0xff] %vm264, 0.0
        %269 = vst.msk [vmem:[#allocation2 + $0x20] sm:$0xff] %vm264, 0.0
        %270 = vst.msk [vmem:[#allocation2 + $0x28] sm:$0xff] %vm264, 0.0
        %271 = vst.msk [vmem:[#allocation2 + $0x30] sm:$0xff] %vm264, 0.0
        %272 = vst.msk [vmem:[#allocation2 + $0x38] sm:$0xff] %vm264, 0.0
        %273 = vst.msk [vmem:[#allocation2 + $0x40] sm:$0xff] %vm264, 0.0
        %274 = vst.msk [vmem:[#allocation2 + $0x48] sm:$0xff] %vm264, 0.0
        %275 = vst.msk [vmem:[#allocation2 + $0x50] sm:$0xff] %vm264, 0.0
        %276 = vst.msk [vmem:[#allocation2 + $0x58] sm:$0xff] %vm264, 0.0
        %277 = vst.msk [vmem:[#allocation2 + $0x60] sm:$0xff] %vm264, 0.0
        %278 = vst.msk [vmem:[#allocation2 + $0x68] sm:$0xff] %vm264, 0.0
        %279 = vst.msk [vmem:[#allocation2 + $0x70] sm:$0xff] %vm264, 0.0
        %280 = vst.msk [vmem:[#allocation2 + $0x78] sm:$0xff] %vm264, 0.0
        %281 = vst.msk [vmem:[#allocation2 + $0x80] sm:$0xff] %vm264, 0.0
        %282 = vst.msk [vmem:[#allocation2 + $0x88] sm:$0xff] %vm264, 0.0
        %283 = vst.msk [vmem:[#allocation2 + $0x90] sm:$0xff] %vm264, 0.0
        %284 = vst.msk [vmem:[#allocation2 + $0x98] sm:$0xff] %vm264, 0.0
        %285 = vst.msk [vmem:[#allocation2 + $0xa0] sm:$0xff] %vm264, 0.0
        %286 = vst.msk [vmem:[#allocation2 + $0xa8] sm:$0xff] %vm264, 0.0
        %287 = vst.msk [vmem:[#allocation2 + $0xb0] sm:$0xff] %vm264, 0.0
        %288 = vst.msk [vmem:[#allocation2 + $0xb8] sm:$0xff] %vm264, 0.0
        %289 = vst.msk [vmem:[#allocation2 + $0xc0] sm:$0xff] %vm264, 0.0
        %290 = vst.msk [vmem:[#allocation2 + $0xc8] sm:$0xff] %vm264, 0.0
        %291 = vst.msk [vmem:[#allocation2 + $0xd0] sm:$0xff] %vm264, 0.0
        %292 = vst.msk [vmem:[#allocation2 + $0xd8] sm:$0xff] %vm264, 0.0
        %293 = vst.msk [vmem:[#allocation2 + $0xe0] sm:$0xff] %vm264, 0.0
        %294 = vst.msk [vmem:[#allocation2 + $0xe8] sm:$0xff] %vm264, 0.0
        %295 = vst.msk [vmem:[#allocation2 + $0xf0] sm:$0xff] %vm264, 0.0
        %296 = vst.msk [vmem:[#allocation2 + $0xf8] sm:$0xff] %vm264, 0.0
      $region36: #{tpu_custom_call.1} parent=31 // pred_fallthru
        _
      %v297 = vld [vmem:[#allocation2] sm:$0xff]
      %v298 = vld [vmem:[#allocation2 + $0x8] sm:$0xff]
      %v299 = vld [vmem:[#allocation2 + $0x10] sm:$0xff]
      %v300 = vld [vmem:[#allocation2 + $0x18] sm:$0xff]
      %v301 = vld [vmem:[#allocation2 + $0x20] sm:$0xff]
      %v302 = vld [vmem:[#allocation2 + $0x28] sm:$0xff]
      %v303 = vld [vmem:[#allocation2 + $0x30] sm:$0xff]
      %v304 = vld [vmem:[#allocation2 + $0x38] sm:$0xff]
      %v305 = vld [vmem:[#allocation2 + $0x40] sm:$0xff]
      %v306 = vld [vmem:[#allocation2 + $0x48] sm:$0xff]
      %v307 = vld [vmem:[#allocation2 + $0x50] sm:$0xff]
      %v308 = vld [vmem:[#allocation2 + $0x58] sm:$0xff]
      %v309 = vld [vmem:[#allocation2 + $0x60] sm:$0xff]
      %v310 = vld [vmem:[#allocation2 + $0x68] sm:$0xff]
      %v311 = vld [vmem:[#allocation2 + $0x70] sm:$0xff]
      %v312 = vld [vmem:[#allocation2 + $0x78] sm:$0xff]
      %v313 = vld [vmem:[#allocation2 + $0x80] sm:$0xff]
      %v314 = vld [vmem:[#allocation2 + $0x88] sm:$0xff]
      %v315 = vld [vmem:[#allocation2 + $0x90] sm:$0xff]
      %v316 = vld [vmem:[#allocation2 + $0x98] sm:$0xff]
      %v317 = vld [vmem:[#allocation2 + $0xa0] sm:$0xff]
      %v318 = vld [vmem:[#allocation2 + $0xa8] sm:$0xff]
      %v319 = vld [vmem:[#allocation2 + $0xb0] sm:$0xff]
      %v320 = vld [vmem:[#allocation2 + $0xb8] sm:$0xff]
      %v321 = vld [vmem:[#allocation2 + $0xc0] sm:$0xff]
      %v322 = vld [vmem:[#allocation2 + $0xc8] sm:$0xff]
      %v323 = vld [vmem:[#allocation2 + $0xd0] sm:$0xff]
      %v324 = vld [vmem:[#allocation2 + $0xd8] sm:$0xff]
      %v325 = vld [vmem:[#allocation2 + $0xe0] sm:$0xff]
      %v326 = vld [vmem:[#allocation2 + $0xe8] sm:$0xff]
      %v327 = vld [vmem:[#allocation2 + $0xf0] sm:$0xff]
      %v328 = vld [vmem:[#allocation2 + $0xf8] sm:$0xff]
      %v329 = vld [vmem:[%s236] sm:$0xf]
      %v330 = vld [vmem:[%s236 + $0x4] sm:$0xf]
      %v331 = vld [vmem:[%s236 + $0x8] sm:$0xf]
      %v332 = vld [vmem:[%s236 + $0xc] sm:$0xf]
      %v333 = vld [vmem:[%s236 + $0x10] sm:$0xf]
      %v334 = vld [vmem:[%s236 + $0x14] sm:$0xf]
      %v335 = vld [vmem:[%s236 + $0x18] sm:$0xf]
      %v336 = vld [vmem:[%s236 + $0x1c] sm:$0xf]
      %v337 = vld [vmem:[%s236 + $0x20] sm:$0xf]
      %v338 = vld [vmem:[%s236 + $0x24] sm:$0xf]
      %v339 = vld [vmem:[%s236 + $0x28] sm:$0xf]
      %v340 = vld [vmem:[%s236 + $0x2c] sm:$0xf]
      %v341 = vld [vmem:[%s236 + $0x30] sm:$0xf]
      %v342 = vld [vmem:[%s236 + $0x34] sm:$0xf]
      %v343 = vld [vmem:[%s236 + $0x38] sm:$0xf]
      %v344 = vld [vmem:[%s236 + $0x3c] sm:$0xf]
      %v345 = vld [vmem:[%s236 + $0x40] sm:$0xf]
      %v346 = vld [vmem:[%s236 + $0x44] sm:$0xf]
      %v347 = vld [vmem:[%s236 + $0x48] sm:$0xf]
      %v348 = vld [vmem:[%s236 + $0x4c] sm:$0xf]
      %v349 = vld [vmem:[%s236 + $0x50] sm:$0xf]
      %v350 = vld [vmem:[%s236 + $0x54] sm:$0xf]
      %v351 = vld [vmem:[%s236 + $0x58] sm:$0xf]
      %v352 = vld [vmem:[%s236 + $0x5c] sm:$0xf]
      %v353 = vld [vmem:[%s236 + $0x60] sm:$0xf]
      %v354 = vld [vmem:[%s236 + $0x64] sm:$0xf]
      %v355 = vld [vmem:[%s236 + $0x68] sm:$0xf]
      %v356 = vld [vmem:[%s236 + $0x6c] sm:$0xf]
      %v357 = vld [vmem:[%s236 + $0x70] sm:$0xf]
      %v358 = vld [vmem:[%s236 + $0x74] sm:$0xf]
      %v359 = vld [vmem:[%s236 + $0x78] sm:$0xf]
      %v360 = vld [vmem:[%s236 + $0x7c] sm:$0xf]
      %v361 = vld [vmem:[%s245] sm:$0xf]
      %v362 = vld [vmem:[%s245 + $0x4] sm:$0xf]
      %v363 = vld [vmem:[%s245 + $0x8] sm:$0xf]
      %v364 = vld [vmem:[%s245 + $0xc] sm:$0xf]
      %v365 = vld [vmem:[%s245 + $0x10] sm:$0xf]
      %v366 = vld [vmem:[%s245 + $0x14] sm:$0xf]
      %v367 = vld [vmem:[%s245 + $0x18] sm:$0x1]
      %v400 = vunpack.c.l.b16 %v329
      %v401 = vunpack.c.l.b16 %v330
      %v402 = vunpack.c.l.b16 %v331
      %v403 = vunpack.c.l.b16 %v332
      %v404 = vunpack.c.l.b16 %v333
      %v405 = vunpack.c.l.b16 %v334
      %v406 = vunpack.c.l.b16 %v335
      %v407 = vunpack.c.l.b16 %v336
      %v408 = vunpack.c.l.b16 %v337
      %v409 = vunpack.c.l.b16 %v338
      %v410 = vunpack.c.l.b16 %v339
      %v411 = vunpack.c.l.b16 %v340
      %v412 = vunpack.c.l.b16 %v341
      %v413 = vunpack.c.l.b16 %v342
      %v414 = vunpack.c.l.b16 %v343
      %v415 = vunpack.c.l.b16 %v344
      %v416 = vunpack.c.l.b16 %v345
      %v417 = vunpack.c.l.b16 %v346
      %v418 = vunpack.c.l.b16 %v347
      %v419 = vunpack.c.l.b16 %v348
      %v420 = vunpack.c.l.b16 %v349
      %v421 = vunpack.c.l.b16 %v350
      %v422 = vunpack.c.l.b16 %v351
      %v423 = vunpack.c.l.b16 %v352
      %v424 = vunpack.c.l.b16 %v353
      %v425 = vunpack.c.l.b16 %v354
      %v426 = vunpack.c.l.b16 %v355
      %v427 = vunpack.c.l.b16 %v356
      %v428 = vunpack.c.l.b16 %v357
      %v429 = vunpack.c.l.b16 %v358
      %v430 = vunpack.c.l.b16 %v359
      %v431 = vunpack.c.l.b16 %v360
      %v432 = vpack.c.b16 %v401, %v400
      %v433 = vpack.c.b16 %v403, %v402
      %v434 = vpack.c.b16 %v405, %v404
      %v435 = vpack.c.b16 %v407, %v406
      %v436 = vpack.c.b16 %v409, %v408
      %v437 = vpack.c.b16 %v411, %v410
      %v438 = vpack.c.b16 %v413, %v412
      %v439 = vpack.c.b16 %v415, %v414
      %v440 = vpack.c.b16 %v417, %v416
      %v441 = vpack.c.b16 %v419, %v418
      %v442 = vpack.c.b16 %v421, %v420
      %v443 = vpack.c.b16 %v423, %v422
      %v444 = vpack.c.b16 %v425, %v424
      %v445 = vpack.c.b16 %v427, %v426
      %v446 = vpack.c.b16 %v429, %v428
      %v447 = vpack.c.b16 %v431, %v430
      %v455 = vunpack.c.l.b16 %v361
      %v456 = vunpack.c.l.b16 %v362
      %v457 = vunpack.c.l.b16 %v363
      %v458 = vunpack.c.l.b16 %v364
      %v459 = vunpack.c.l.b16 %v365
      %v460 = vunpack.c.l.b16 %v366
      %v461 = vunpack.c.l.b16 %v367
      %v462 = vpack.c.b16 %v456, %v455
      %v463 = vpack.c.b16 %v458, %v457
      %v464 = vpack.c.b16 %v460, %v459
      %v465 = vpack.c.b16 %v461, %v461
      %vm469 = vcmask 400384
      %v471 = vsel %vm469, %v432, 0
      %v474 = vsel %vm469, %v433, 0
      %v477 = vsel %vm469, %v434, 0
      %v480 = vsel %vm469, %v435, 0
      %v483 = vsel %vm469, %v436, 0
      %v486 = vsel %vm469, %v437, 0
      %v489 = vsel %vm469, %v438, 0
      %v492 = vsel %vm469, %v439, 0
      %v495 = vsel %vm469, %v440, 0
      %v498 = vsel %vm469, %v441, 0
      %v501 = vsel %vm469, %v442, 0
      %v504 = vsel %vm469, %v443, 0
      %v507 = vsel %vm469, %v444, 0
      %v510 = vsel %vm469, %v445, 0
      %v513 = vsel %vm469, %v446, 0
      %v516 = vsel %vm469, %v447, 0
      %vm518 = vcmask 1040384
      %v519 = vsel 0, 4294967295, 65535
      %v520 = vsel %vm518, %v519, 0
      %v522 = vand.u32 %v465, %v520
      %524 = vmatpush.bf16.msra.mxu0 0
      %525 = vmatpush.bf16.msra.mxu0 0
      %526 = vmatpush.bf16.msra.mxu0 0
      %527 = vmatpush.bf16.msra.mxu0 0
      %528 = vmatpush.bf16.msra.mxu0 %v522
      %529 = vmatpush.bf16.msra.mxu0 %v464
      %530 = vmatpush.bf16.msra.mxu0 %v463
      %531 = vmatpush.bf16.msra.mxu0 %v462
      %532 = vmatmul.bf16.gmra.mxu0 %v471
      %v533 = vpop.f32.mrf.mxu0
      %v534 = vadd.f32 0.0, %v533
      %v535 = vpop.f32.mrf.mxu0
      %v536 = vadd.f32 0.0, %v535
      %537 = vmatmul.bf16.gmra.mxu0 %v474
      %v538 = vpop.f32.mrf.mxu0
      %v539 = vadd.f32 0.0, %v538
      %v540 = vpop.f32.mrf.mxu0
      %v541 = vadd.f32 0.0, %v540
      %542 = vmatmul.bf16.gmra.mxu0 %v477
      %v543 = vpop.f32.mrf.mxu0
      %v544 = vadd.f32 0.0, %v543
      %v545 = vpop.f32.mrf.mxu0
      %v546 = vadd.f32 0.0, %v545
      %547 = vmatmul.bf16.gmra.mxu0 %v480
      %v548 = vpop.f32.mrf.mxu0
      %v549 = vadd.f32 0.0, %v548
      %v550 = vpop.f32.mrf.mxu0
      %v551 = vadd.f32 0.0, %v550
      %552 = vmatmul.bf16.gmra.mxu0 %v483
      %v553 = vpop.f32.mrf.mxu0
      %v554 = vadd.f32 0.0, %v553
      %v555 = vpop.f32.mrf.mxu0
      %v556 = vadd.f32 0.0, %v555
      %557 = vmatmul.bf16.gmra.mxu0 %v486
      %v558 = vpop.f32.mrf.mxu0
      %v559 = vadd.f32 0.0, %v558
      %v560 = vpop.f32.mrf.mxu0
      %v561 = vadd.f32 0.0, %v560
      %562 = vmatmul.bf16.gmra.mxu0 %v489
      %v563 = vpop.f32.mrf.mxu0
      %v564 = vadd.f32 0.0, %v563
      %v565 = vpop.f32.mrf.mxu0
      %v566 = vadd.f32 0.0, %v565
      %567 = vmatmul.bf16.gmra.mxu0 %v492
      %v568 = vpop.f32.mrf.mxu0
      %v569 = vadd.f32 0.0, %v568
      %v570 = vpop.f32.mrf.mxu0
      %v571 = vadd.f32 0.0, %v570
      %572 = vmatmul.bf16.gmra.mxu0 %v495
      %v573 = vpop.f32.mrf.mxu0
      %v574 = vadd.f32 0.0, %v573
      %v575 = vpop.f32.mrf.mxu0
      %v576 = vadd.f32 0.0, %v575
      %577 = vmatmul.bf16.gmra.mxu0 %v498
      %v578 = vpop.f32.mrf.mxu0
      %v579 = vadd.f32 0.0, %v578
      %v580 = vpop.f32.mrf.mxu0
      %v581 = vadd.f32 0.0, %v580
      %582 = vmatmul.bf16.gmra.mxu0 %v501
      %v583 = vpop.f32.mrf.mxu0
      %v584 = vadd.f32 0.0, %v583
      %v585 = vpop.f32.mrf.mxu0
      %v586 = vadd.f32 0.0, %v585
      %587 = vmatmul.bf16.gmra.mxu0 %v504
      %v588 = vpop.f32.mrf.mxu0
      %v589 = vadd.f32 0.0, %v588
      %v590 = vpop.f32.mrf.mxu0
      %v591 = vadd.f32 0.0, %v590
      %592 = vmatmul.bf16.gmra.mxu0 %v507
      %v593 = vpop.f32.mrf.mxu0
      %v594 = vadd.f32 0.0, %v593
      %v595 = vpop.f32.mrf.mxu0
      %v596 = vadd.f32 0.0, %v595
      %597 = vmatmul.bf16.gmra.mxu0 %v510
      %v598 = vpop.f32.mrf.mxu0
      %v599 = vadd.f32 0.0, %v598
      %v600 = vpop.f32.mrf.mxu0
      %v601 = vadd.f32 0.0, %v600
      %602 = vmatmul.bf16.gmra.mxu0 %v513
      %v603 = vpop.f32.mrf.mxu0
      %v604 = vadd.f32 0.0, %v603
      %v605 = vpop.f32.mrf.mxu0
      %v606 = vadd.f32 0.0, %v605
      %607 = vmatmul.bf16.gmra.mxu0 %v516
      %v608 = vpop.f32.mrf.mxu0
      %v609 = vadd.f32 0.0, %v608
      %v610 = vpop.f32.mrf.mxu0
      %v611 = vadd.f32 0.0, %v610
      %612 = vdwg.mxu0
      %v613 = vadd.f32 %v297, %v534
      %v614 = vadd.f32 %v298, %v536
      %v615 = vadd.f32 %v299, %v539
      %v616 = vadd.f32 %v300, %v541
      %v617 = vadd.f32 %v301, %v544
      %v618 = vadd.f32 %v302, %v546
      %v619 = vadd.f32 %v303, %v549
      %v620 = vadd.f32 %v304, %v551
      %v621 = vadd.f32 %v305, %v554
      %v622 = vadd.f32 %v306, %v556
      %v623 = vadd.f32 %v307, %v559
      %v624 = vadd.f32 %v308, %v561
      %v625 = vadd.f32 %v309, %v564
      %v626 = vadd.f32 %v310, %v566
      %v627 = vadd.f32 %v311, %v569
      %v628 = vadd.f32 %v312, %v571
      %v629 = vadd.f32 %v313, %v574
      %v630 = vadd.f32 %v314, %v576
      %v631 = vadd.f32 %v315, %v579
      %v632 = vadd.f32 %v316, %v581
      %v633 = vadd.f32 %v317, %v584
      %v634 = vadd.f32 %v318, %v586
      %v635 = vadd.f32 %v319, %v589
      %v636 = vadd.f32 %v320, %v591
      %v637 = vadd.f32 %v321, %v594
      %v638 = vadd.f32 %v322, %v596
      %v639 = vadd.f32 %v323, %v599
      %v640 = vadd.f32 %v324, %v601
      %v641 = vadd.f32 %v325, %v604
      %v642 = vadd.f32 %v326, %v606
      %v643 = vadd.f32 %v327, %v609
      %v644 = vadd.f32 %v328, %v611
      %vm645 = vcmask 523264
      %646 = vst.msk [vmem:[#allocation2] sm:$0xff] %vm645, %v613
      %647 = vst.msk [vmem:[#allocation2 + $0x8] sm:$0xff] %vm645, %v614
      %648 = vst.msk [vmem:[#allocation2 + $0x10] sm:$0xff] %vm645, %v615
      %649 = vst.msk [vmem:[#allocation2 + $0x18] sm:$0xff] %vm645, %v616
      %650 = vst.msk [vmem:[#allocation2 + $0x20] sm:$0xff] %vm645, %v617
      %651 = vst.msk [vmem:[#allocation2 + $0x28] sm:$0xff] %vm645, %v618
      %652 = vst.msk [vmem:[#allocation2 + $0x30] sm:$0xff] %vm645, %v619
      %653 = vst.msk [vmem:[#allocation2 + $0x38] sm:$0xff] %vm645, %v620
      %654 = vst.msk [vmem:[#allocation2 + $0x40] sm:$0xff] %vm645, %v621
      %655 = vst.msk [vmem:[#allocation2 + $0x48] sm:$0xff] %vm645, %v622
      %656 = vst.msk [vmem:[#allocation2 + $0x50] sm:$0xff] %vm645, %v623
      %657 = vst.msk [vmem:[#allocation2 + $0x58] sm:$0xff] %vm645, %v624
      %658 = vst.msk [vmem:[#allocation2 + $0x60] sm:$0xff] %vm645, %v625
      %659 = vst.msk [vmem:[#allocation2 + $0x68] sm:$0xff] %vm645, %v626
      %660 = vst.msk [vmem:[#allocation2 + $0x70] sm:$0xff] %vm645, %v627
      %661 = vst.msk [vmem:[#allocation2 + $0x78] sm:$0xff] %vm645, %v628
      %662 = vst.msk [vmem:[#allocation2 + $0x80] sm:$0xff] %vm645, %v629
      %663 = vst.msk [vmem:[#allocation2 + $0x88] sm:$0xff] %vm645, %v630
      %664 = vst.msk [vmem:[#allocation2 + $0x90] sm:$0xff] %vm645, %v631
      %665 = vst.msk [vmem:[#allocation2 + $0x98] sm:$0xff] %vm645, %v632
      %666 = vst.msk [vmem:[#allocation2 + $0xa0] sm:$0xff] %vm645, %v633
      %667 = vst.msk [vmem:[#allocation2 + $0xa8] sm:$0xff] %vm645, %v634
      %668 = vst.msk [vmem:[#allocation2 + $0xb0] sm:$0xff] %vm645, %v635
      %669 = vst.msk [vmem:[#allocation2 + $0xb8] sm:$0xff] %vm645, %v636
      %670 = vst.msk [vmem:[#allocation2 + $0xc0] sm:$0xff] %vm645, %v637
      %671 = vst.msk [vmem:[#allocation2 + $0xc8] sm:$0xff] %vm645, %v638
      %672 = vst.msk [vmem:[#allocation2 + $0xd0] sm:$0xff] %vm645, %v639
      %673 = vst.msk [vmem:[#allocation2 + $0xd8] sm:$0xff] %vm645, %v640
      %674 = vst.msk [vmem:[#allocation2 + $0xe0] sm:$0xff] %vm645, %v641
      %675 = vst.msk [vmem:[#allocation2 + $0xe8] sm:$0xff] %vm645, %v642
      %676 = vst.msk [vmem:[#allocation2 + $0xf0] sm:$0xff] %vm645, %v643
      %677 = vst.msk [vmem:[#allocation2 + $0xf8] sm:$0xff] %vm645, %v644
      // Predicated region
      $region37: #{tpu_custom_call.1} parent=31 // pred_check
        %p678 = pneg %p260
      $region38: #{tpu_custom_call.1} parent=31 // pred_check_branch
        %680 = sbr.rel (%p678) target = $region40
      $region39: #{tpu_custom_call.1} parent=31 // pred_region
        %v681 = vld [vmem:[#allocation2] sm:$0xff]
        %v682 = vld [vmem:[#allocation2 + $0x8] sm:$0xff]
        %v683 = vld [vmem:[#allocation2 + $0x10] sm:$0xff]
        %v684 = vld [vmem:[#allocation2 + $0x18] sm:$0xff]
        %v685 = vld [vmem:[#allocation2 + $0x20] sm:$0xff]
        %v686 = vld [vmem:[#allocation2 + $0x28] sm:$0xff]
        %v687 = vld [vmem:[#allocation2 + $0x30] sm:$0xff]
        %v688 = vld [vmem:[#allocation2 + $0x38] sm:$0xff]
        %v689 = vld [vmem:[#allocation2 + $0x40] sm:$0xff]
        %v690 = vld [vmem:[#allocation2 + $0x48] sm:$0xff]
        %v691 = vld [vmem:[#allocation2 + $0x50] sm:$0xff]
        %v692 = vld [vmem:[#allocation2 + $0x58] sm:$0xff]
        %v693 = vld [vmem:[#allocation2 + $0x60] sm:$0xff]
        %v694 = vld [vmem:[#allocation2 + $0x68] sm:$0xff]
        %v695 = vld [vmem:[#allocation2 + $0x70] sm:$0xff]
        %v696 = vld [vmem:[#allocation2 + $0x78] sm:$0xff]
        %v697 = vld [vmem:[#allocation2 + $0x80] sm:$0xff]
        %v698 = vld [vmem:[#allocation2 + $0x88] sm:$0xff]
        %v699 = vld [vmem:[#allocation2 + $0x90] sm:$0xff]
        %v700 = vld [vmem:[#allocation2 + $0x98] sm:$0xff]
        %v701 = vld [vmem:[#allocation2 + $0xa0] sm:$0xff]
        %v702 = vld [vmem:[#allocation2 + $0xa8] sm:$0xff]
        %v703 = vld [vmem:[#allocation2 + $0xb0] sm:$0xff]
        %v704 = vld [vmem:[#allocation2 + $0xb8] sm:$0xff]
        %v705 = vld [vmem:[#allocation2 + $0xc0] sm:$0xff]
        %v706 = vld [vmem:[#allocation2 + $0xc8] sm:$0xff]
        %v707 = vld [vmem:[#allocation2 + $0xd0] sm:$0xff]
        %v708 = vld [vmem:[#allocation2 + $0xd8] sm:$0xff]
        %v709 = vld [vmem:[#allocation2 + $0xe0] sm:$0xff]
        %v710 = vld [vmem:[#allocation2 + $0xe8] sm:$0xff]
        %v711 = vld [vmem:[#allocation2 + $0xf0] sm:$0xff]
        %v712 = vld [vmem:[#allocation2 + $0xf8] sm:$0xff]
        %v713 = vld [vmem:[%s249] sm:$0x1]
        %v715 = vperm.slane %v713, 0
        %v717 = vadd.f32 %v681, %v715
        %v718 = vadd.f32 %v682, %v715
        %v719 = vadd.f32 %v683, %v715
        %v720 = vadd.f32 %v684, %v715
        %v721 = vadd.f32 %v685, %v715
        %v722 = vadd.f32 %v686, %v715
        %v723 = vadd.f32 %v687, %v715
        %v724 = vadd.f32 %v688, %v715
        %v725 = vadd.f32 %v689, %v715
        %v726 = vadd.f32 %v690, %v715
        %v727 = vadd.f32 %v691, %v715
        %v728 = vadd.f32 %v692, %v715
        %v729 = vadd.f32 %v693, %v715
        %v730 = vadd.f32 %v694, %v715
        %v731 = vadd.f32 %v695, %v715
        %v732 = vadd.f32 %v696, %v715
        %v733 = vadd.f32 %v697, %v715
        %v734 = vadd.f32 %v698, %v715
        %v735 = vadd.f32 %v699, %v715
        %v736 = vadd.f32 %v700, %v715
        %v737 = vadd.f32 %v701, %v715
        %v738 = vadd.f32 %v702, %v715
        %v739 = vadd.f32 %v703, %v715
        %v740 = vadd.f32 %v704, %v715
        %v741 = vadd.f32 %v705, %v715
        %v742 = vadd.f32 %v706, %v715
        %v743 = vadd.f32 %v707, %v715
        %v744 = vadd.f32 %v708, %v715
        %v745 = vadd.f32 %v709, %v715
        %v746 = vadd.f32 %v710, %v715
        %v747 = vadd.f32 %v711, %v715
        %v748 = vadd.f32 %v712, %v715
        %v749 = vpack.c.bf16 %v717, %v717
        %v750 = vpack.c.bf16 %v718, %v718
        %v751 = vpack.c.bf16 %v719, %v719
        %v752 = vpack.c.bf16 %v720, %v720
        %v753 = vpack.c.bf16 %v721, %v721
        %v754 = vpack.c.bf16 %v722, %v722
        %v755 = vpack.c.bf16 %v723, %v723
        %v756 = vpack.c.bf16 %v724, %v724
        %v757 = vpack.c.bf16 %v725, %v725
        %v758 = vpack.c.bf16 %v726, %v726
        %v759 = vpack.c.bf16 %v727, %v727
        %v760 = vpack.c.bf16 %v728, %v728
        %v761 = vpack.c.bf16 %v729, %v729
        %v762 = vpack.c.bf16 %v730, %v730
        %v763 = vpack.c.bf16 %v731, %v731
        %v764 = vpack.c.bf16 %v732, %v732
        %v765 = vpack.c.bf16 %v733, %v733
        %v766 = vpack.c.bf16 %v734, %v734
        %v767 = vpack.c.bf16 %v735, %v735
        %v768 = vpack.c.bf16 %v736, %v736
        %v769 = vpack.c.bf16 %v737, %v737
        %v770 = vpack.c.bf16 %v738, %v738
        %v771 = vpack.c.bf16 %v739, %v739
        %v772 = vpack.c.bf16 %v740, %v740
        %v773 = vpack.c.bf16 %v741, %v741
        %v774 = vpack.c.bf16 %v742, %v742
        %v775 = vpack.c.bf16 %v743, %v743
        %v776 = vpack.c.bf16 %v744, %v744
        %v777 = vpack.c.bf16 %v745, %v745
        %v778 = vpack.c.bf16 %v746, %v746
        %v779 = vpack.c.bf16 %v747, %v747
        %v780 = vpack.c.bf16 %v748, %v748
        %vm781 = vcmask 519168
        %782 = vst.msk [vmem:[%s257] sm:$0xf] %vm781, %v749
        %783 = vst.msk [vmem:[%s257 + $0x4] sm:$0xf] %vm781, %v750
        %784 = vst.msk [vmem:[%s257 + $0x8] sm:$0xf] %vm781, %v751
        %785 = vst.msk [vmem:[%s257 + $0xc] sm:$0xf] %vm781, %v752
        %786 = vst.msk [vmem:[%s257 + $0x10] sm:$0xf] %vm781, %v753
        %787 = vst.msk [vmem:[%s257 + $0x14] sm:$0xf] %vm781, %v754
        %788 = vst.msk [vmem:[%s257 + $0x18] sm:$0xf] %vm781, %v755
        %789 = vst.msk [vmem:[%s257 + $0x1c] sm:$0xf] %vm781, %v756
        %790 = vst.msk [vmem:[%s257 + $0x20] sm:$0xf] %vm781, %v757
        %791 = vst.msk [vmem:[%s257 + $0x24] sm:$0xf] %vm781, %v758
        %792 = vst.msk [vmem:[%s257 + $0x28] sm:$0xf] %vm781, %v759
        %793 = vst.msk [vmem:[%s257 + $0x2c] sm:$0xf] %vm781, %v760
        %794 = vst.msk [vmem:[%s257 + $0x30] sm:$0xf] %vm781, %v761
        %795 = vst.msk [vmem:[%s257 + $0x34] sm:$0xf] %vm781, %v762
        %796 = vst.msk [vmem:[%s257 + $0x38] sm:$0xf] %vm781, %v763
        %797 = vst.msk [vmem:[%s257 + $0x3c] sm:$0xf] %vm781, %v764
        %798 = vst.msk [vmem:[%s257 + $0x40] sm:$0xf] %vm781, %v765
        %799 = vst.msk [vmem:[%s257 + $0x44] sm:$0xf] %vm781, %v766
        %800 = vst.msk [vmem:[%s257 + $0x48] sm:$0xf] %vm781, %v767
        %801 = vst.msk [vmem:[%s257 + $0x4c] sm:$0xf] %vm781, %v768
        %802 = vst.msk [vmem:[%s257 + $0x50] sm:$0xf] %vm781, %v769
        %803 = vst.msk [vmem:[%s257 + $0x54] sm:$0xf] %vm781, %v770
        %804 = vst.msk [vmem:[%s257 + $0x58] sm:$0xf] %vm781, %v771
        %805 = vst.msk [vmem:[%s257 + $0x5c] sm:$0xf] %vm781, %v772
        %806 = vst.msk [vmem:[%s257 + $0x60] sm:$0xf] %vm781, %v773
        %807 = vst.msk [vmem:[%s257 + $0x64] sm:$0xf] %vm781, %v774
        %808 = vst.msk [vmem:[%s257 + $0x68] sm:$0xf] %vm781, %v775
        %809 = vst.msk [vmem:[%s257 + $0x6c] sm:$0xf] %vm781, %v776
        %810 = vst.msk [vmem:[%s257 + $0x70] sm:$0xf] %vm781, %v777
        %811 = vst.msk [vmem:[%s257 + $0x74] sm:$0xf] %vm781, %v778
        %812 = vst.msk [vmem:[%s257 + $0x78] sm:$0xf] %vm781, %v779
        %813 = vst.msk [vmem:[%s257 + $0x7c] sm:$0xf] %vm781, %v780
      $region40: #{tpu_custom_call.1} parent=31 // pred_fallthru
        _
      %s814 = smul.u32 32, %s19
      %p815 = scmp.lt.s32.totalorder %s814, 63
      %s816 = scalar_select %p815, %s814, 63
      %p817 = scmp.lt.s32.totalorder %s20, 0
      %s818 = scalar_select %p817, %s20, 0
      %s819 = sadd.s32 %s818, %s816
      %s820 = smul.addr %s819, 4
      %s821 = scalar_lea.vmem %s3, %s820
      // Predicated region
      $region41: #{tpu_custom_call.1} parent=31 // pred_check
        %p822 = pneg %p135
      $region42: #{tpu_custom_call.1} parent=31 // pred_check_branch
        %824 = sbr.rel (%p822) target = $region44
      $region43: #{tpu_custom_call.1} parent=31 // pred_region
        %s825 = smul.u32 32, %s19
      $region44: #{tpu_custom_call.1} parent=31 // pred_fallthru
        _
    $region32: #{tpu_custom_call.1} parent=5 // pred_fallthru
      _
    %p826 = scmp.le.s32.totalorder 2, %s9
    // Predicated region
    $region45: #{tpu_custom_call.1} parent=5 // pred_check
      %p827 = pneg %p826
    $region46: #{tpu_custom_call.1} parent=5 // pred_check_branch
      %829 = sbr.rel (%p827) target = $region48
    $region47: #{tpu_custom_call.1} parent=5 // pred_region
      %s830 = ssub.s32 %s9, 2
      // Predicated region
      $region49: #{tpu_custom_call.1} parent=47 // pred_check
        %p831 = pneg %p141
      $region50: #{tpu_custom_call.1} parent=47 // pred_check_branch
        %833 = sbr.rel (%p831) target = $region52
      $region51: #{tpu_custom_call.1} parent=47 // pred_region
        %s834 = smul.u32 32, %s22
        %p835 = scmp.lt.s32.totalorder %s834, 63
        %s836 = scalar_select %p835, %s834, 63
        %p837 = scmp.lt.s32.totalorder %s23, 0
        %s838 = scalar_select %p837, %s23, 0
        %s839 = sadd.s32 %s838, %s836
        %s840 = smul.addr %s839, 4
        %s841 = scalar_lea.vmem %s3, %s840
      $region52: #{tpu_custom_call.1} parent=47 // pred_fallthru
        _
    $region48: #{tpu_custom_call.1} parent=5 // pred_fallthru
      _
  $region6: #{tpu_custom_call.1} parent=0 // loop_footer
    %s13 = sadd.s32 1, %s9
  $region7: #{tpu_custom_call.1} parent=0 // loop_footer_branch
    %8 = sbr.rel target = $region3
  $region8: #{tpu_custom_call.1} parent=0 // loop_exit
    _

</llo_original>
